<compile_context>
chip_gen: v5e
topology: v5e:2x2
jax: 0.10.0
libtpu: 0.0.40
codegen_flags: <defaults>
</compile_context>

<pallas_src>
import numpy as np

import jax
import jax.numpy as jnp
from jax.experimental import pallas as pl
from jax.experimental.pallas import tpu as pltpu


# ---------------------------------------------------------------------------
# Tiling policy
# ---------------------------------------------------------------------------
_LANE = 128
_VMEM_LIMIT_BYTES = 32 * 1024 * 1024   # v7x-safe (64 MiB VMEM), also fine on v5e/v6e
_TILE_BUDGET_BYTES = 20 * 1024 * 1024  # part of the limit spent on pipelined x/out tiles
_MAX_TS = 32 * 1024                    # lanes per spatial tile
_MAX_TB = 8                            # cap on unrolled per-step batch loop


def _choose_tiles(B, C, Dout, S):
    """Pick (batch tile TB, spatial tile TS) from the VMEM budget."""
    bytes_per_lane = 2 * (C + Dout) * 4          # double-buffered in + out, f32
    ts_cap = max(_LANE, (_TILE_BUDGET_BYTES // bytes_per_lane) // _LANE * _LANE)
    ts_cap = min(ts_cap, _MAX_TS)
    if S <= ts_cap:
        TS = S                                   # full spatial extent (always a legal block)
    else:
        TS = ts_cap                              # multiple of 128; prefer a divisor of S
        for t in range(ts_cap, _LANE - 1, -_LANE):
            if S % t == 0:
                TS = t                           # lane-dense, unmasked stores
                break
    TB = 1
    if TS == S:                                  # small images: pack several per grid step
        TB = min(B, _MAX_TB, max(1, _TILE_BUDGET_BYTES // (bytes_per_lane * TS)))
        while B % TB:
            TB -= 1
    return TB, TS


# ---------------------------------------------------------------------------
# Pallas kernel: fused (scattered-weight) pointwise conv + bias + ReLU
# ---------------------------------------------------------------------------
def _fused_pointwise_conv_relu_kernel(x_ref, w_ref, b_ref, o_ref):
    # x_ref: (TB, C, TS)  w_ref: (Dout, C)  b_ref: (Dout, 1)  o_ref: (TB, Dout, TS)
    w = w_ref[...]
    bias = b_ref[...]
    for i in range(x_ref.shape[0]):              # static, small unrolled batch loop
        acc = jnp.dot(w, x_ref[i], preferred_element_type=jnp.float32)
        o_ref[i] = jnp.maximum(acc + bias, 0.0).astype(o_ref.dtype)


def fused_pointwise_conv_relu(x_flat, w_full, b_col, *, useful_flops_per_px=None):
    """x_flat: (B, C, S) f32, w_full: (Dout, C) f32, b_col: (Dout, 1) f32
       -> (B, Dout, S) f32 = ReLU(w_full @ x + b) per image."""
    B, C, S = x_flat.shape
    Dout = w_full.shape[0]
    TB, TS = _choose_tiles(B, C, Dout, S)
    grid = (pl.cdiv(S, TS), B // TB)             # spatial axis FIRST -> megacore shards it

    if useful_flops_per_px is None:
        useful_flops_per_px = C * Dout
    cost = pl.CostEstimate(
        flops=2 * B * S * useful_flops_per_px,
        transcendentals=0,
        bytes_accessed=4 * (B * C * S + B * Dout * S + Dout * C + Dout),
    )

    def _call(single_buffer_weights):
        if single_buffer_weights:
            # Resident operands (constant index_map) do not need double buffers.
            w_spec = pl.BlockSpec((Dout, C), lambda s, b: (0, 0),
                                  pipeline_mode=pl.Buffered(1))
            b_spec = pl.BlockSpec((Dout, 1), lambda s, b: (0, 0),
                                  pipeline_mode=pl.Buffered(1))
        else:
            w_spec = pl.BlockSpec((Dout, C), lambda s, b: (0, 0))
            b_spec = pl.BlockSpec((Dout, 1), lambda s, b: (0, 0))
        return pl.pallas_call(
            _fused_pointwise_conv_relu_kernel,
            out_shape=jax.ShapeDtypeStruct((B, Dout, S), x_flat.dtype),
            grid_spec=pltpu.PrefetchScalarGridSpec(
                num_scalar_prefetch=0,
                grid=grid,
                in_specs=[
                    pl.BlockSpec((TB, C, TS), lambda s, b: (b, 0, s)),
                    w_spec,
                    b_spec,
                ],
                out_specs=pl.BlockSpec((TB, Dout, TS), lambda s, b: (b, 0, s)),
            ),
            compiler_params=pltpu.CompilerParams(
                dimension_semantics=("parallel", "parallel"),
                vmem_limit_bytes=_VMEM_LIMIT_BYTES,
            ),
            cost_estimate=cost,
        )(x_flat, w_full, b_col)

    try:
        return _call(True)
    except Exception:
        # pipeline_mode=Buffered(1) not supported on this jax build; the VMEM
        # cost of default double-buffering the tiny resident weight is negligible.
        return _call(False)


# ---------------------------------------------------------------------------
# One-time (out-of-trace) fusion of all processors into a scattered weight.
# ---------------------------------------------------------------------------
def build_fused_params(proc_ranges, params, num_in_channels, dtype=np.float32):
    """Precompute (once, outside the hot path) the fused weight/bias.

    Processor i is a 1x1 Conv2d (weight (Cin_i, Cout_i), bias (1, Cout_i)) on the
    channels listed by its ranges.  Being linear, its gather folds into a single
    (sum(Cout_i), C) weight whose columns scatter the processor weights back to
    the original channel positions; duplicated channels accumulate.  Row-block
    order == torch.cat(dim=1) order.

    Returns (w_full (Dout, C), bias (Dout, 1), sum_i Cin_i * Cout_i).
    """
    params_np = [(np.asarray(w), np.asarray(b)) for (w, b) in params]
    Dout = sum(w.shape[1] for w, _ in params_np)
    w_full = np.zeros((Dout, num_in_channels), dtype=dtype)
    bias = np.zeros((Dout, 1), dtype=dtype)
    useful = 0
    d_off = 0
    for ranges, (w, b) in zip(proc_ranges, params_np):
        cin, cout = w.shape
        useful += cin * cout
        k = 0
        for r0, r1 in ranges:
            n = r1 - r0
            w_full[d_off:d_off + cout, r0:r1] += w[k:k + n, :].T
            k += n
        assert k == cin, "processor weight Cin does not match its channel ranges"
        bias[d_off:d_off + cout, 0] = b[0]
        d_off += cout
    return jnp.asarray(w_full), jnp.asarray(bias), useful


# ---------------------------------------------------------------------------
# SplitProcessor forward: reshape -> one fused Pallas kernel -> reshape.
# ---------------------------------------------------------------------------
def split_processor_forward(x, fused_w, fused_b, *, useful_flops_per_px=None):
    """
    x        : (B, C, H, W) float32, NCHW (matches PyTorch convention)
    fused_w  : (Dout, C) scattered fused weight from build_fused_params
    fused_b  : (Dout, 1) fused bias column
    returns  : (B, Dout, H, W) float32, == torch.cat([proc_i(x[:, ranges_i])], dim=1)
    """
    B, C, H, W = x.shape
    S = H * W
    x_flat = x.reshape(B, C, S)                  # NCHW kept; lane axis = H*W (lane-dense)
    y_flat = fused_pointwise_conv_relu(x_flat, fused_w, fused_b,
                                       useful_flops_per_px=useful_flops_per_px)
    return y_flat.reshape(B, fused_w.shape[0], H, W)


# ---------------------------------------------------------------------------
# Reference (pure jnp) for a sanity check
# ---------------------------------------------------------------------------
def split_processor_reference(x, proc_ranges, params):
    pieces = []
    for ranges, (w, b) in zip(proc_ranges, params):
        proc_fms = []
        for r0, r1 in ranges:
            proc_fms += list(range(r0, r1))
        xp = x[:, jnp.array(proc_fms, dtype=jnp.int32)]        # (B, Cin, H, W)
        y = jnp.einsum("bchw,cd->bdhw", xp, w) + b[0][None, :, None, None]
        pieces.append(jnp.maximum(y, 0.0))
    return jnp.concatenate(pieces, axis=1)


if __name__ == "__main__":
    key = jax.random.PRNGKey(0)
    k_x, k_w0, k_b0, k_w1, k_b1, k_w2, k_b2 = jax.random.split(key, 7)

    # Small shapes consistent with the module's NCHW forward.
    B, C, H, W = 2, 4, 16, 16
    x = jax.random.normal(k_x, (B, C, H, W), dtype=jnp.float32)

    # Processor configuration (mirrors the 'fm_range'/'fm_ranges' dicts):
    #   proc 0: fm_range  [0, 2]            -> Conv1x1(2 -> 4) + ReLU
    #   proc 1: fm_ranges [[2, 3], [3, 4]]  -> Conv1x1(2 -> 4) + ReLU
    #   proc 2: fm_ranges [[1, 3]]          -> Conv1x1(2 -> 4) + ReLU (reuses channels 1,2)
    proc_ranges = [
        [[0, 2]],
        [[2, 3], [3, 4]],
        [[1, 3]],
    ]
    params = [
        (0.1 * jax.random.normal(k_w0, (2, 4), dtype=jnp.float32),
         0.1 * jax.random.normal(k_b0, (1, 4), dtype=jnp.float32)),
        (0.1 * jax.random.normal(k_w1, (2, 4), dtype=jnp.float32),
         0.1 * jax.random.normal(k_b1, (1, 4), dtype=jnp.float32)),
        (0.1 * jax.random.normal(k_w2, (2, 4), dtype=jnp.float32),
         0.1 * jax.random.normal(k_b2, (1, 4), dtype=jnp.float32)),
    ]

    # One-time precompute (kept out of the per-call trace).
    fused_w, fused_b, useful = build_fused_params(proc_ranges, params, C)

    out = split_processor_forward(x, fused_w, fused_b, useful_flops_per_px=useful)
    out = jax.block_until_ready(out)

    ref = split_processor_reference(x, proc_ranges, params)
    assert out.shape == (B, 12, H, W), out.shape
    assert jnp.allclose(out, ref, atol=1e-5, rtol=1e-5), "mismatch vs reference"

    print("KERNEL_OK")
</pallas_src>

<mosaic_0001>
module attributes {stable_mosaic.version = 11 : i64} {
  func.func @_fused_pointwise_conv_relu_kernel(%arg0: i32, %arg1: i32, %arg2: memref<2x4x256xf32, #tpu.memory_space<vmem>>, %arg3: memref<12x4xf32, #tpu.memory_space<vmem>>, %arg4: memref<12x1xf32, #tpu.memory_space<vmem>>, %arg5: memref<2x12x256xf32, #tpu.memory_space<vmem>>) attributes {dimension_semantics = [#tpu.dimension_semantics<parallel>, #tpu.dimension_semantics<parallel>], iteration_bounds = array<i64: 1, 1>, scalar_prefetch = 0 : i64, scratch_operands = 0 : i64, tpu.core_type = #tpu.core_type<tc>, window_params = [{transform_indices = @transform_0, window_bounds = array<i64: 2, 4, 256>}, {pipeline_mode = #tpu.pipeline_mode<synchronous>, transform_indices = @transform_1, window_bounds = array<i64: 12, 4>}, {pipeline_mode = #tpu.pipeline_mode<synchronous>, transform_indices = @transform_2, window_bounds = array<i64: 12, 1>}, {transform_indices = @transform_3, window_bounds = array<i64: 2, 12, 256>}]} {
    %c0 = arith.constant 0 : index
    %c0_0 = arith.constant 0 : index
    %0 = vector.load %arg3[%c0, %c0_0] : memref<12x4xf32, #tpu.memory_space<vmem>>, vector<12x4xf32>
    %c0_1 = arith.constant 0 : index
    %c0_2 = arith.constant 0 : index
    %1 = vector.load %arg4[%c0_1, %c0_2] : memref<12x1xf32, #tpu.memory_space<vmem>>, vector<12x1xf32>
    %c0_3 = arith.constant 0 : index
    %c0_4 = arith.constant 0 : index
    %c0_5 = arith.constant 0 : index
    %2 = vector.load %arg2[%c0_3, %c0_4, %c0_5] : memref<2x4x256xf32, #tpu.memory_space<vmem>>, vector<1x4x256xf32>
    %3 = vector.shape_cast %2 : vector<1x4x256xf32> to vector<4x256xf32>
    %cst = arith.constant dense<0.000000e+00> : vector<12x256xf32>
    %4 = tpu.matmul %0, %3, %cst {dimension_numbers = #tpu.dot_dimension_numbers<[1], [0], [0], [1], [0, 0, 1, 1], [], []>} : vector<12x4xf32>, vector<4x256xf32>, vector<12x256xf32> -> vector<12x256xf32>
    %5 = vector.broadcast %1 : vector<12x1xf32> to vector<12x256xf32>
    %6 = arith.addf %4, %5 : vector<12x256xf32>
    %cst_6 = arith.constant 0.000000e+00 : f32
    %7 = vector.broadcast %cst_6 : f32 to vector<12x256xf32>
    %8 = arith.maximumf %6, %7 : vector<12x256xf32>
    %c0_7 = arith.constant 0 : index
    %c0_8 = arith.constant 0 : index
    %c0_9 = arith.constant 0 : index
    %9 = vector.load %arg5[%c0_7, %c0_8, %c0_9] : memref<2x12x256xf32, #tpu.memory_space<vmem>>, vector<1x12x256xf32>
    %10 = vector.shape_cast %9 : vector<1x12x256xf32> to vector<12x256xf32>
    %11 = vector.shape_cast %8 : vector<12x256xf32> to vector<1x12x256xf32>
    tpu.vector_store %arg5[%c0_7, %c0_8, %c0_9], %11 {strides = array<i32>} : memref<2x12x256xf32, #tpu.memory_space<vmem>>, vector<1x12x256xf32>,
    %c1 = arith.constant 1 : index
    %c0_10 = arith.constant 0 : index
    %c0_11 = arith.constant 0 : index
    %12 = vector.load %arg2[%c1, %c0_10, %c0_11] : memref<2x4x256xf32, #tpu.memory_space<vmem>>, vector<1x4x256xf32>
    %13 = vector.shape_cast %12 : vector<1x4x256xf32> to vector<4x256xf32>
    %cst_12 = arith.constant dense<0.000000e+00> : vector<12x256xf32>
    %14 = tpu.matmul %0, %13, %cst_12 {dimension_numbers = #tpu.dot_dimension_numbers<[1], [0], [0], [1], [0, 0, 1, 1], [], []>} : vector<12x4xf32>, vector<4x256xf32>, vector<12x256xf32> -> vector<12x256xf32>
    %15 = vector.broadcast %1 : vector<12x1xf32> to vector<12x256xf32>
    %16 = arith.addf %14, %15 : vector<12x256xf32>
    %cst_13 = arith.constant 0.000000e+00 : f32
    %17 = vector.broadcast %cst_13 : f32 to vector<12x256xf32>
    %18 = arith.maximumf %16, %17 : vector<12x256xf32>
    %c1_14 = arith.constant 1 : index
    %c0_15 = arith.constant 0 : index
    %c0_16 = arith.constant 0 : index
    %19 = vector.load %arg5[%c1_14, %c0_15, %c0_16] : memref<2x12x256xf32, #tpu.memory_space<vmem>>, vector<1x12x256xf32>
    %20 = vector.shape_cast %19 : vector<1x12x256xf32> to vector<12x256xf32>
    %21 = vector.shape_cast %18 : vector<12x256xf32> to vector<1x12x256xf32>
    tpu.vector_store %arg5[%c1_14, %c0_15, %c0_16], %21 {strides = array<i32>} : memref<2x12x256xf32, #tpu.memory_space<vmem>>, vector<1x12x256xf32>,
    return
  }
  func.func @transform_0(%arg0: i32, %arg1: i32) -> (i32, i32, i32) {
    %c0_i32 = arith.constant 0 : i32
    %c0_i32_0 = arith.constant 0 : i32
    return %arg1, %c0_i32, %arg0 : i32, i32, i32
  }
  func.func @transform_1(%arg0: i32, %arg1: i32) -> (i32, i32) {
    %c0_i32 = arith.constant 0 : i32
    %c0_i32_0 = arith.constant 0 : i32
    %c0_i32_1 = arith.constant 0 : i32
    return %c0_i32, %c0_i32_0 : i32, i32
  }
  func.func @transform_2(%arg0: i32, %arg1: i32) -> (i32, i32) {
    %c0_i32 = arith.constant 0 : i32
    %c0_i32_0 = arith.constant 0 : i32
    %c0_i32_1 = arith.constant 0 : i32
    return %c0_i32, %c0_i32_0 : i32, i32
  }
  func.func @transform_3(%arg0: i32, %arg1: i32) -> (i32, i32, i32) {
    %c0_i32 = arith.constant 0 : i32
    %c0_i32_0 = arith.constant 0 : i32
    return %arg1, %c0_i32, %arg0 : i32, i32, i32
  }
}

module attributes {stable_mosaic.version = 11 : i64} {
  func.func @_fused_pointwise_conv_relu_kernel(%arg0: i32, %arg1: i32, %arg2: memref<2x4x256xf32, #tpu.memory_space<vmem>>, %arg3: memref<12x4xf32, #tpu.memory_space<vmem>>, %arg4: memref<12x1xf32, #tpu.memory_space<vmem>>, %arg5: memref<2x12x256xf32, #tpu.memory_space<vmem>>) attributes {dimension_semantics = [#tpu.dimension_semantics<parallel>, #tpu.dimension_semantics<parallel>], iteration_bounds = array<i64: 1, 1>, scalar_prefetch = 0 : i64, scratch_operands = 0 : i64, tpu.core_type = #tpu.core_type<tc>, window_params = [{transform_indices = @transform_0, window_bounds = array<i64: 2, 4, 256>}, {pipeline_mode = #tpu.pipeline_mode<synchronous>, transform_indices = @transform_1, window_bounds = array<i64: 12, 4>}, {pipeline_mode = #tpu.pipeline_mode<synchronous>, transform_indices = @transform_2, window_bounds = array<i64: 12, 1>}, {transform_indices = @transform_3, window_bounds = array<i64: 2, 12, 256>}]} {
    %c0 = arith.constant 0 : index
    %c0_0 = arith.constant 0 : index
    %0 = vector.load %arg3[%c0, %c0_0] : memref<12x4xf32, #tpu.memory_space<vmem>>, vector<12x4xf32>
    %c0_1 = arith.constant 0 : index
    %c0_2 = arith.constant 0 : index
    %1 = vector.load %arg4[%c0_1, %c0_2] : memref<12x1xf32, #tpu.memory_space<vmem>>, vector<12x1xf32>
    %c0_3 = arith.constant 0 : index
    %c0_4 = arith.constant 0 : index
    %c0_5 = arith.constant 0 : index
    %2 = vector.load %arg2[%c0_3, %c0_4, %c0_5] : memref<2x4x256xf32, #tpu.memory_space<vmem>>, vector<1x4x256xf32>
    %3 = vector.shape_cast %2 : vector<1x4x256xf32> to vector<4x256xf32>
    %cst = arith.constant dense<0.000000e+00> : vector<12x256xf32>
    %4 = tpu.matmul %0, %3, %cst {dimension_numbers = #tpu.dot_dimension_numbers<[1], [0], [0], [1], [0, 0, 1, 1], [], []>} : vector<12x4xf32>, vector<4x256xf32>, vector<12x256xf32> -> vector<12x256xf32>
    %5 = vector.broadcast %1 : vector<12x1xf32> to vector<12x256xf32>
    %6 = arith.addf %4, %5 : vector<12x256xf32>
    %cst_6 = arith.constant 0.000000e+00 : f32
    %7 = vector.broadcast %cst_6 : f32 to vector<12x256xf32>
    %8 = arith.maximumf %6, %7 : vector<12x256xf32>
    %c0_7 = arith.constant 0 : index
    %c0_8 = arith.constant 0 : index
    %c0_9 = arith.constant 0 : index
    %9 = vector.load %arg5[%c0_7, %c0_8, %c0_9] : memref<2x12x256xf32, #tpu.memory_space<vmem>>, vector<1x12x256xf32>
    %10 = vector.shape_cast %9 : vector<1x12x256xf32> to vector<12x256xf32>
    %11 = vector.shape_cast %8 : vector<12x256xf32> to vector<1x12x256xf32>
    tpu.vector_store %arg5[%c0_7, %c0_8, %c0_9], %11 {strides = array<i32>} : memref<2x12x256xf32, #tpu.memory_space<vmem>>, vector<1x12x256xf32>,
    %c1 = arith.constant 1 : index
    %c0_10 = arith.constant 0 : index
    %c0_11 = arith.constant 0 : index
    %12 = vector.load %arg2[%c1, %c0_10, %c0_11] : memref<2x4x256xf32, #tpu.memory_space<vmem>>, vector<1x4x256xf32>
    %13 = vector.shape_cast %12 : vector<1x4x256xf32> to vector<4x256xf32>
    %cst_12 = arith.constant dense<0.000000e+00> : vector<12x256xf32>
    %14 = tpu.matmul %0, %13, %cst_12 {dimension_numbers = #tpu.dot_dimension_numbers<[1], [0], [0], [1], [0, 0, 1, 1], [], []>} : vector<12x4xf32>, vector<4x256xf32>, vector<12x256xf32> -> vector<12x256xf32>
    %15 = vector.broadcast %1 : vector<12x1xf32> to vector<12x256xf32>
    %16 = arith.addf %14, %15 : vector<12x256xf32>
    %cst_13 = arith.constant 0.000000e+00 : f32
    %17 = vector.broadcast %cst_13 : f32 to vector<12x256xf32>
    %18 = arith.maximumf %16, %17 : vector<12x256xf32>
    %c1_14 = arith.constant 1 : index
    %c0_15 = arith.constant 0 : index
    %c0_16 = arith.constant 0 : index
    %19 = vector.load %arg5[%c1_14, %c0_15, %c0_16] : memref<2x12x256xf32, #tpu.memory_space<vmem>>, vector<1x12x256xf32>
    %20 = vector.shape_cast %19 : vector<1x12x256xf32> to vector<12x256xf32>
    %21 = vector.shape_cast %18 : vector<12x256xf32> to vector<1x12x256xf32>
    tpu.vector_store %arg5[%c1_14, %c0_15, %c0_16], %21 {strides = array<i32>} : memref<2x12x256xf32, #tpu.memory_space<vmem>>, vector<1x12x256xf32>,
    return
  }
  func.func @transform_0(%arg0: i32, %arg1: i32) -> (i32, i32, i32) {
    %c0_i32 = arith.constant 0 : i32
    %c0_i32_0 = arith.constant 0 : i32
    return %arg1, %c0_i32, %arg0 : i32, i32, i32
  }
  func.func @transform_1(%arg0: i32, %arg1: i32) -> (i32, i32) {
    %c0_i32 = arith.constant 0 : i32
    %c0_i32_0 = arith.constant 0 : i32
    %c0_i32_1 = arith.constant 0 : i32
    return %c0_i32, %c0_i32_0 : i32, i32
  }
  func.func @transform_2(%arg0: i32, %arg1: i32) -> (i32, i32) {
    %c0_i32 = arith.constant 0 : i32
    %c0_i32_0 = arith.constant 0 : i32
    %c0_i32_1 = arith.constant 0 : i32
    return %c0_i32, %c0_i32_0 : i32, i32
  }
  func.func @transform_3(%arg0: i32, %arg1: i32) -> (i32, i32, i32) {
    %c0_i32 = arith.constant 0 : i32
    %c0_i32_0 = arith.constant 0 : i32
    return %arg1, %c0_i32, %arg0 : i32, i32, i32
  }
}

</mosaic_0001>

<llo_original>
// kernel: tpu_custom_call.1
$region0: #{tpu_custom_call.1}
  #allocation0 [shape = 'u32[]', space=smem, size = 0x4, offset = 0x4, fixed_abs, tag = 'smem constant byte address 0x4 - core index']
  #allocation1 [shape = 'u32[72,128]{1,0:T(1,128)}', space=vmem, size = 0x9000, scoped, tag = 'internal scratch']
  %s0 = inlined_call_operand.vmem [shape: f32[2,4,256], index: 0, kind: input, shape index: {}]
  %s1 = inlined_call_operand.vmem [shape: f32[12,4], index: 1, kind: input, shape index: {}]
  %s2 = inlined_call_operand.vmem [shape: f32[12,1], index: 2, kind: input, shape index: {}]
  %s3 = inlined_call_operand.vmem [shape: f32[2,12,256], index: 3, kind: output, shape index: {}]
  %s4 = sld [smem:[#allocation0]]
  $region22: #{tpu_custom_call.1} parent=0
    _
  %s6 = ssub.s32 1, %s4
  %s7 = scalar_select 0, %s6, %s4
  // Predicated region
  $region2: #{tpu_custom_call.1} parent=0 // pred_check
    _
  $region3: #{tpu_custom_call.1} parent=0 // pred_check_branch
    %9 = sbr.rel (0) target = $region5
  $region4: #{tpu_custom_call.1} parent=0 // pred_region
    _
  $region5: #{tpu_custom_call.1} parent=0 // pred_fallthru
    _
  // Predicated region
  $region6: #{tpu_custom_call.1} parent=0 // pred_check
    _
  $region7: #{tpu_custom_call.1} parent=0 // pred_check_branch
    %11 = sbr.rel (0) target = $region9
  $region8: #{tpu_custom_call.1} parent=0 // pred_region
    _
  $region9: #{tpu_custom_call.1} parent=0 // pred_fallthru
    _
  // Predicated region
  $region10: #{tpu_custom_call.1} parent=0 // pred_check
    _
  $region11: #{tpu_custom_call.1} parent=0 // pred_check_branch
    %13 = sbr.rel (0) target = $region13
  $region12: #{tpu_custom_call.1} parent=0 // pred_region
    _
  $region13: #{tpu_custom_call.1} parent=0 // pred_fallthru
    _
  %v14 = vld [vmem:[%s1] sm:$0xff]
  %v15 = vld [vmem:[%s1 + $0x8] sm:$0xf]
  %v16 = vld [vmem:[%s2] sm:$0xff]
  %v17 = vld [vmem:[%s2 + $0x8] sm:$0xf]
  %v18 = vld [vmem:[%s0] sm:$0xff]
  %20 = vset.pattern.permute.xlu0 0
  %21 = vperm.xlu0 %20, %v16
  %v22 = vpop.permute.xlu0 %21
  %25 = vset.pattern.permute.xlu0 0
  %26 = vperm.xlu0 %25, %v17
  %v27 = vpop.permute.xlu0 %26
  %30 = vst [vmem:[#allocation1] ss:$2 sm:$0xff] %v18
  %v31 = vld.sshfl [vmem:[#allocation1] sm:$0xff pattern:$0x75316420]
  %v32 = vld.sshfl [vmem:[#allocation1 + $0x8] sm:$0xff pattern:$0x75316420]
  %vm33 = vcmask 31744
  %v35 = vsel %vm33, %v14, 0
  %v38 = vsel %vm33, %v15, 0
  %vm40 = vcmask 1043456
  %v41 = vsel %vm40, %v31, 0
  %v43 = vsel %vm40, %v32, 0
  %45 = vmatpush.msra.mxu0 0.0
  %46 = vmatpush.msra.mxu0 0.0
  %47 = vmatpush.msra.mxu0 0.0
  %48 = vmatpush.msra.mxu0 0.0
  %49 = vmatpush.msra.mxu0 0.0
  %50 = vmatpush.msra.mxu0 0.0
  %51 = vmatpush.msra.mxu0 0.0
  %52 = vmatpush.msra.mxu0 0.0
  %53 = vmatpush.msra.mxu0 0.0
  %54 = vmatpush.msra.mxu0 0.0
  %55 = vmatpush.msra.mxu0 0.0
  %56 = vmatpush.msra.mxu0 0.0
  %57 = vmatpush.msra.mxu0 0.0
  %58 = vmatpush.msra.mxu0 0.0
  %59 = vmatpush.msra.mxu0 0.0
  %60 = vmatpush.msra.mxu0 %v41
  %61 = vmatmul.f32.gmra.mxu0 %v35
  %v62 = vpop.f32.mrf.mxu0
  %v63 = vadd.f32 %v22, %v62
  %64 = vmatmul.f32.gmra.mxu0 %v38
  %v65 = vpop.f32.mrf.mxu0
  %v66 = vadd.f32 %v27, %v65
  %67 = vdwg.mxu0
  %68 = vmatpush.msra.mxu0 0.0
  %69 = vmatpush.msra.mxu0 0.0
  %70 = vmatpush.msra.mxu0 0.0
  %71 = vmatpush.msra.mxu0 0.0
  %72 = vmatpush.msra.mxu0 0.0
  %73 = vmatpush.msra.mxu0 0.0
  %74 = vmatpush.msra.mxu0 0.0
  %75 = vmatpush.msra.mxu0 0.0
  %76 = vmatpush.msra.mxu0 0.0
  %77 = vmatpush.msra.mxu0 0.0
  %78 = vmatpush.msra.mxu0 0.0
  %79 = vmatpush.msra.mxu0 0.0
  %80 = vmatpush.msra.mxu0 0.0
  %81 = vmatpush.msra.mxu0 0.0
  %82 = vmatpush.msra.mxu0 0.0
  %83 = vmatpush.msra.mxu0 %v43
  %84 = vmatmul.f32.gmra.mxu0 %v35
  %v85 = vpop.f32.mrf.mxu0
  %v86 = vadd.f32 %v22, %v85
  %87 = vmatmul.f32.gmra.mxu0 %v38
  %v88 = vpop.f32.mrf.mxu0
  %v89 = vadd.f32 %v27, %v88
  %90 = vdwg.mxu0
  %v91 = vmax.f32 %v63, 0.0
  %v92 = vmax.f32 %v86, 0.0
  %v93 = vmax.f32 %v66, 0.0
  %v94 = vmax.f32 %v89, 0.0
  %95 = vst [vmem:[%s3] sm:$0xff] %v91
  %96 = vst [vmem:[%s3 + $0x8] sm:$0xff] %v92
  %97 = vst [vmem:[%s3 + $0x10] sm:$0xf] %v93
  %98 = vst [vmem:[%s3 + $0x18] sm:$0xf] %v94
  %s99 = scalar_lea.vmem %s0, 8
  %v100 = vld [vmem:[%s99] sm:$0xff]
  %102 = vst [vmem:[#allocation1] ss:$2 sm:$0xff] %v100
  %v103 = vld.sshfl [vmem:[#allocation1] sm:$0xff pattern:$0x75316420]
  %v104 = vld.sshfl [vmem:[#allocation1 + $0x8] sm:$0xff pattern:$0x75316420]
  %v105 = vsel %vm40, %v103, 0
  %v107 = vsel %vm40, %v104, 0
  %109 = vmatpush.msra.mxu0 0.0
  %110 = vmatpush.msra.mxu0 0.0
  %111 = vmatpush.msra.mxu0 0.0
  %112 = vmatpush.msra.mxu0 0.0
  %113 = vmatpush.msra.mxu0 0.0
  %114 = vmatpush.msra.mxu0 0.0
  %115 = vmatpush.msra.mxu0 0.0
  %116 = vmatpush.msra.mxu0 0.0
  %117 = vmatpush.msra.mxu0 0.0
  %118 = vmatpush.msra.mxu0 0.0
  %119 = vmatpush.msra.mxu0 0.0
  %120 = vmatpush.msra.mxu0 0.0
  %121 = vmatpush.msra.mxu0 0.0
  %122 = vmatpush.msra.mxu0 0.0
  %123 = vmatpush.msra.mxu0 0.0
  %124 = vmatpush.msra.mxu0 %v105
  %125 = vmatmul.f32.gmra.mxu0 %v35
  %v126 = vpop.f32.mrf.mxu0
  %v127 = vadd.f32 %v22, %v126
  %128 = vmatmul.f32.gmra.mxu0 %v38
  %v129 = vpop.f32.mrf.mxu0
  %v130 = vadd.f32 %v27, %v129
  %131 = vdwg.mxu0
  %132 = vmatpush.msra.mxu0 0.0
  %133 = vmatpush.msra.mxu0 0.0
  %134 = vmatpush.msra.mxu0 0.0
  %135 = vmatpush.msra.mxu0 0.0
  %136 = vmatpush.msra.mxu0 0.0
  %137 = vmatpush.msra.mxu0 0.0
  %138 = vmatpush.msra.mxu0 0.0
  %139 = vmatpush.msra.mxu0 0.0
  %140 = vmatpush.msra.mxu0 0.0
  %141 = vmatpush.msra.mxu0 0.0
  %142 = vmatpush.msra.mxu0 0.0
  %143 = vmatpush.msra.mxu0 0.0
  %144 = vmatpush.msra.mxu0 0.0
  %145 = vmatpush.msra.mxu0 0.0
  %146 = vmatpush.msra.mxu0 0.0
  %147 = vmatpush.msra.mxu0 %v107
  %148 = vmatmul.f32.gmra.mxu0 %v35
  %v149 = vpop.f32.mrf.mxu0
  %v150 = vadd.f32 %v22, %v149
  %151 = vmatmul.f32.gmra.mxu0 %v38
  %v152 = vpop.f32.mrf.mxu0
  %v153 = vadd.f32 %v27, %v152
  %154 = vdwg.mxu0
  %v155 = vmax.f32 %v127, 0.0
  %v156 = vmax.f32 %v150, 0.0
  %v157 = vmax.f32 %v130, 0.0
  %v158 = vmax.f32 %v153, 0.0
  %s159 = scalar_lea.vmem %s3, 32
  %160 = vst [vmem:[%s159] sm:$0xff] %v155
  %161 = vst [vmem:[%s159 + $0x8] sm:$0xff] %v156
  %162 = vst [vmem:[%s159 + $0x10] sm:$0xf] %v157
  %163 = vst [vmem:[%s159 + $0x18] sm:$0xf] %v158
  // Predicated region
  $region14: #{tpu_custom_call.1} parent=0 // pred_check
    _
  $region15: #{tpu_custom_call.1} parent=0 // pred_check_branch
    %165 = sbr.rel (0) target = $region17
  $region16: #{tpu_custom_call.1} parent=0 // pred_region
    _
  $region17: #{tpu_custom_call.1} parent=0 // pred_fallthru
    _
  // Predicated region
  $region18: #{tpu_custom_call.1} parent=0 // pred_check
    _
  $region19: #{tpu_custom_call.1} parent=0 // pred_check_branch
    %167 = sbr.rel (0) target = $region21
  $region20: #{tpu_custom_call.1} parent=0 // pred_region
    _
  $region21: #{tpu_custom_call.1} parent=0 // pred_fallthru
    _

// kernel: tpu_custom_call.1
$region0: #{tpu_custom_call.1}
  #allocation0 [shape = 'u32[]', space=smem, size = 0x4, offset = 0x4, fixed_abs, tag = 'smem constant byte address 0x4 - core index']
  #allocation1 [shape = 'u32[72,128]{1,0:T(1,128)}', space=vmem, size = 0x9000, scoped, tag = 'internal scratch']
  %s0 = inlined_call_operand.vmem [shape: f32[2,4,256], index: 0, kind: input, shape index: {}]
  %s1 = inlined_call_operand.vmem [shape: f32[12,4], index: 1, kind: input, shape index: {}]
  %s2 = inlined_call_operand.vmem [shape: f32[12,1], index: 2, kind: input, shape index: {}]
  %s3 = inlined_call_operand.vmem [shape: f32[2,12,256], index: 3, kind: output, shape index: {}]
  %s4 = sld [smem:[#allocation0]]
  $region22: #{tpu_custom_call.1} parent=0
    _
  %s6 = ssub.s32 1, %s4
  %s7 = scalar_select 0, %s6, %s4
  // Predicated region
  $region2: #{tpu_custom_call.1} parent=0 // pred_check
    _
  $region3: #{tpu_custom_call.1} parent=0 // pred_check_branch
    %9 = sbr.rel (0) target = $region5
  $region4: #{tpu_custom_call.1} parent=0 // pred_region
    _
  $region5: #{tpu_custom_call.1} parent=0 // pred_fallthru
    _
  // Predicated region
  $region6: #{tpu_custom_call.1} parent=0 // pred_check
    _
  $region7: #{tpu_custom_call.1} parent=0 // pred_check_branch
    %11 = sbr.rel (0) target = $region9
  $region8: #{tpu_custom_call.1} parent=0 // pred_region
    _
  $region9: #{tpu_custom_call.1} parent=0 // pred_fallthru
    _
  // Predicated region
  $region10: #{tpu_custom_call.1} parent=0 // pred_check
    _
  $region11: #{tpu_custom_call.1} parent=0 // pred_check_branch
    %13 = sbr.rel (0) target = $region13
  $region12: #{tpu_custom_call.1} parent=0 // pred_region
    _
  $region13: #{tpu_custom_call.1} parent=0 // pred_fallthru
    _
  %v14 = vld [vmem:[%s1] sm:$0xff]
  %v15 = vld [vmem:[%s1 + $0x8] sm:$0xf]
  %v16 = vld [vmem:[%s2] sm:$0xff]
  %v17 = vld [vmem:[%s2 + $0x8] sm:$0xf]
  %v18 = vld [vmem:[%s0] sm:$0xff]
  %20 = vset.pattern.permute.xlu0 0
  %21 = vperm.xlu0 %20, %v16
  %v22 = vpop.permute.xlu0 %21
  %25 = vset.pattern.permute.xlu0 0
  %26 = vperm.xlu0 %25, %v17
  %v27 = vpop.permute.xlu0 %26
  %30 = vst [vmem:[#allocation1] ss:$2 sm:$0xff] %v18
  %v31 = vld.sshfl [vmem:[#allocation1] sm:$0xff pattern:$0x75316420]
  %v32 = vld.sshfl [vmem:[#allocation1 + $0x8] sm:$0xff pattern:$0x75316420]
  %vm33 = vcmask 31744
  %v35 = vsel %vm33, %v14, 0
  %v38 = vsel %vm33, %v15, 0
  %vm40 = vcmask 1043456
  %v41 = vsel %vm40, %v31, 0
  %v43 = vsel %vm40, %v32, 0
  %45 = vmatpush.msra.mxu0 0.0
  %46 = vmatpush.msra.mxu0 0.0
  %47 = vmatpush.msra.mxu0 0.0
  %48 = vmatpush.msra.mxu0 0.0
  %49 = vmatpush.msra.mxu0 0.0
  %50 = vmatpush.msra.mxu0 0.0
  %51 = vmatpush.msra.mxu0 0.0
  %52 = vmatpush.msra.mxu0 0.0
  %53 = vmatpush.msra.mxu0 0.0
  %54 = vmatpush.msra.mxu0 0.0
  %55 = vmatpush.msra.mxu0 0.0
  %56 = vmatpush.msra.mxu0 0.0
  %57 = vmatpush.msra.mxu0 0.0
  %58 = vmatpush.msra.mxu0 0.0
  %59 = vmatpush.msra.mxu0 0.0
  %60 = vmatpush.msra.mxu0 %v41
  %61 = vmatmul.f32.gmra.mxu0 %v35
  %v62 = vpop.f32.mrf.mxu0
  %v63 = vadd.f32 %v22, %v62
  %64 = vmatmul.f32.gmra.mxu0 %v38
  %v65 = vpop.f32.mrf.mxu0
  %v66 = vadd.f32 %v27, %v65
  %67 = vdwg.mxu0
  %68 = vmatpush.msra.mxu0 0.0
  %69 = vmatpush.msra.mxu0 0.0
  %70 = vmatpush.msra.mxu0 0.0
  %71 = vmatpush.msra.mxu0 0.0
  %72 = vmatpush.msra.mxu0 0.0
  %73 = vmatpush.msra.mxu0 0.0
  %74 = vmatpush.msra.mxu0 0.0
  %75 = vmatpush.msra.mxu0 0.0
  %76 = vmatpush.msra.mxu0 0.0
  %77 = vmatpush.msra.mxu0 0.0
  %78 = vmatpush.msra.mxu0 0.0
  %79 = vmatpush.msra.mxu0 0.0
  %80 = vmatpush.msra.mxu0 0.0
  %81 = vmatpush.msra.mxu0 0.0
  %82 = vmatpush.msra.mxu0 0.0
  %83 = vmatpush.msra.mxu0 %v43
  %84 = vmatmul.f32.gmra.mxu0 %v35
  %v85 = vpop.f32.mrf.mxu0
  %v86 = vadd.f32 %v22, %v85
  %87 = vmatmul.f32.gmra.mxu0 %v38
  %v88 = vpop.f32.mrf.mxu0
  %v89 = vadd.f32 %v27, %v88
  %90 = vdwg.mxu0
  %v91 = vmax.f32 %v63, 0.0
  %v92 = vmax.f32 %v86, 0.0
  %v93 = vmax.f32 %v66, 0.0
  %v94 = vmax.f32 %v89, 0.0
  %95 = vst [vmem:[%s3] sm:$0xff] %v91
  %96 = vst [vmem:[%s3 + $0x8] sm:$0xff] %v92
  %97 = vst [vmem:[%s3 + $0x10] sm:$0xf] %v93
  %98 = vst [vmem:[%s3 + $0x18] sm:$0xf] %v94
  %s99 = scalar_lea.vmem %s0, 8
  %v100 = vld [vmem:[%s99] sm:$0xff]
  %102 = vst [vmem:[#allocation1] ss:$2 sm:$0xff] %v100
  %v103 = vld.sshfl [vmem:[#allocation1] sm:$0xff pattern:$0x75316420]
  %v104 = vld.sshfl [vmem:[#allocation1 + $0x8] sm:$0xff pattern:$0x75316420]
  %v105 = vsel %vm40, %v103, 0
  %v107 = vsel %vm40, %v104, 0
  %109 = vmatpush.msra.mxu0 0.0
  %110 = vmatpush.msra.mxu0 0.0
  %111 = vmatpush.msra.mxu0 0.0
  %112 = vmatpush.msra.mxu0 0.0
  %113 = vmatpush.msra.mxu0 0.0
  %114 = vmatpush.msra.mxu0 0.0
  %115 = vmatpush.msra.mxu0 0.0
  %116 = vmatpush.msra.mxu0 0.0
  %117 = vmatpush.msra.mxu0 0.0
  %118 = vmatpush.msra.mxu0 0.0
  %119 = vmatpush.msra.mxu0 0.0
  %120 = vmatpush.msra.mxu0 0.0
  %121 = vmatpush.msra.mxu0 0.0
  %122 = vmatpush.msra.mxu0 0.0
  %123 = vmatpush.msra.mxu0 0.0
  %124 = vmatpush.msra.mxu0 %v105
  %125 = vmatmul.f32.gmra.mxu0 %v35
  %v126 = vpop.f32.mrf.mxu0
  %v127 = vadd.f32 %v22, %v126
  %128 = vmatmul.f32.gmra.mxu0 %v38
  %v129 = vpop.f32.mrf.mxu0
  %v130 = vadd.f32 %v27, %v129
  %131 = vdwg.mxu0
  %132 = vmatpush.msra.mxu0 0.0
  %133 = vmatpush.msra.mxu0 0.0
  %134 = vmatpush.msra.mxu0 0.0
  %135 = vmatpush.msra.mxu0 0.0
  %136 = vmatpush.msra.mxu0 0.0
  %137 = vmatpush.msra.mxu0 0.0
  %138 = vmatpush.msra.mxu0 0.0
  %139 = vmatpush.msra.mxu0 0.0
  %140 = vmatpush.msra.mxu0 0.0
  %141 = vmatpush.msra.mxu0 0.0
  %142 = vmatpush.msra.mxu0 0.0
  %143 = vmatpush.msra.mxu0 0.0
  %144 = vmatpush.msra.mxu0 0.0
  %145 = vmatpush.msra.mxu0 0.0
  %146 = vmatpush.msra.mxu0 0.0
  %147 = vmatpush.msra.mxu0 %v107
  %148 = vmatmul.f32.gmra.mxu0 %v35
  %v149 = vpop.f32.mrf.mxu0
  %v150 = vadd.f32 %v22, %v149
  %151 = vmatmul.f32.gmra.mxu0 %v38
  %v152 = vpop.f32.mrf.mxu0
  %v153 = vadd.f32 %v27, %v152
  %154 = vdwg.mxu0
  %v155 = vmax.f32 %v127, 0.0
  %v156 = vmax.f32 %v150, 0.0
  %v157 = vmax.f32 %v130, 0.0
  %v158 = vmax.f32 %v153, 0.0
  %s159 = scalar_lea.vmem %s3, 32
  %160 = vst [vmem:[%s159] sm:$0xff] %v155
  %161 = vst [vmem:[%s159 + $0x8] sm:$0xff] %v156
  %162 = vst [vmem:[%s159 + $0x10] sm:$0xf] %v157
  %163 = vst [vmem:[%s159 + $0x18] sm:$0xf] %v158
  // Predicated region
  $region14: #{tpu_custom_call.1} parent=0 // pred_check
    _
  $region15: #{tpu_custom_call.1} parent=0 // pred_check_branch
    %165 = sbr.rel (0) target = $region17
  $region16: #{tpu_custom_call.1} parent=0 // pred_region
    _
  $region17: #{tpu_custom_call.1} parent=0 // pred_fallthru
    _
  // Predicated region
  $region18: #{tpu_custom_call.1} parent=0 // pred_check
    _
  $region19: #{tpu_custom_call.1} parent=0 // pred_check_branch
    %167 = sbr.rel (0) target = $region21
  $region20: #{tpu_custom_call.1} parent=0 // pred_region
    _
  $region21: #{tpu_custom_call.1} parent=0 // pred_fallthru
    _

</llo_original>
